<compile_context>
chip_gen: v7x
topology: tpu7x:2x2x1
jax: 0.10.0
libtpu: 0.0.40
codegen_flags: <defaults>
</compile_context>

<pallas_src>
import functools

import jax
import jax.numpy as jnp
import numpy as np
from jax.experimental import pallas as pl
from jax.experimental.pallas import tpu as pltpu

BN_EPS = 1e-5


def backbone_kernel(x_ref, scale_ref, shift_ref, w1_ref, b1_ref,
                    w2_ref, b2_ref, wp_ref, bp_ref, o_ref, *, matmul_dtype):
    bB, S, C = x_ref.shape                    # (block_B, seq_len, enc_in) -- unpadded
    P = wp_ref.shape[0]                       # pred_len
    md = matmul_dtype

    x = x_ref[...]                            # f32 (bB, S, C)

    # ---- folded BatchNorm: xn = x * scale[s] + shift[s] (batch stats hoisted to wrapper) ----
    xn = x * scale_ref[...][None] + shift_ref[...][None]          # (1,S,1) lane/leading broadcast

    # ---- Mlp_feat over the feature axis, batch merged into the matmul M-dim ----
    xm = xn.reshape(bB * S, C)
    h = jnp.dot(xm.astype(md), w1_ref[...],
                preferred_element_type=jnp.float32) + b1_ref[...]
    h = jnp.maximum(h, 0.0)
    y = jnp.dot(h.astype(md), w2_ref[...],
                preferred_element_type=jnp.float32) + b2_ref[...]
    y = y + x.reshape(bB * S, C)              # residual uses pre-BN x

    # ---- temp_proj: Linear(seq_len -> pred_len) along the time axis ----
    # out[b, p, c] = sum_s Wp[p, s] * y[b, s, c] + bp[p]
    # Single batched MXU contraction (flash-attention style dot_general) instead of a
    # Python-unrolled per-row loop.
    y3 = y.reshape(bB, S, C).astype(md)
    wpb = jnp.broadcast_to(wp_ref[...][None], (bB, P, S))
    o = jnp.einsum('bps,bsc->bpc', wpb, y3, preferred_element_type=jnp.float32)
    o_ref[...] = (o + bp_ref[...][None]).astype(o_ref.dtype)


def _pick_block_b(B, S, C, P, max_block_b, vmem_budget_bytes=20 * 1024 * 1024):
    """Largest divisor of B that fits a conservative per-block VMEM budget.

    Capped at B//2 (when B > 1) so the 'parallel' batch grid has >= 2 steps, keeping
    both v7x TensorCores busy.  The budget is sized against v7x's 64 MiB VMEM.
    """
    cap = max(1, min(max_block_b, B if B == 1 else B // 2))
    best = 1
    for bb in range(1, cap + 1):
        if B % bb:
            continue
        # f32 bytes: double-buffered x & out blocks + live temporaries (xn/h/y, wp bcast, o)
        est = 4 * bb * (2 * S * C + 2 * P * C + 3 * S * C + P * S + 2 * P * C)
        if est <= vmem_budget_bytes:
            best = bb
    return best


@functools.partial(jax.jit, static_argnames=("block_b", "matmul_dtype"))
def backbone_forward(x, params, *, block_b=8, matmul_dtype=jnp.float32):
    B, S, C = x.shape
    P = params['wp'].shape[0]
    f32 = jnp.float32

    # ---- BatchNorm1d(seq_len) batch stats (training mode), hoisted out of the kernel.
    # Stats span the whole batch & feature axes per time step, so they are computed
    # before the batch tiling and folded into per-step scale/shift.
    xf = x.astype(f32)
    mean = jnp.mean(xf, axis=(0, 2))                                    # (S,)
    var = jnp.mean(jnp.square(xf - mean[None, :, None]), axis=(0, 2))   # biased, matches PyTorch
    inv = jax.lax.rsqrt(var + BN_EPS)
    scale1 = params['gamma'].astype(f32) * inv                          # (S,)
    shift1 = params['beta'].astype(f32) - mean * scale1                 # (S,)
    scale = scale1[:, None]                                             # (S, 1) narrow tile
    shift = shift1[:, None]                                             # (S, 1)

    # ---- small parameter tensors only; x itself is passed untouched (no HBM pad copy) ----
    # PyTorch Linear weights are (out, in); pre-transpose to (in, out) -> plain x @ W.
    w1t = params['w1'].T.astype(matmul_dtype)                           # (C, C)
    w2t = params['w2'].T.astype(matmul_dtype)                           # (C, C)
    b1 = params['b1'].astype(f32)[None, :]                              # (1, C)
    b2 = params['b2'].astype(f32)[None, :]                              # (1, C)
    wp = params['wp'].astype(matmul_dtype)                              # (P, S)
    bp = params['bp'].astype(f32)[:, None]                              # (P, 1)

    bB = _pick_block_b(B, S, C, P, block_b)
    grid = (B // bB,)

    flops = B * (4 * S * C * C + 2 * P * S * C)
    bytes_accessed = 4 * (B * S * C + B * P * C) \
        + 2 * jnp.dtype(matmul_dtype).itemsize * C * C \
        + jnp.dtype(matmul_dtype).itemsize * P * S \
        + 4 * (2 * S + 2 * C + P)

    kernel = functools.partial(backbone_kernel, matmul_dtype=matmul_dtype)

    out = pl.pallas_call(
        kernel,
        out_shape=jax.ShapeDtypeStruct((B, P, C), x.dtype),
        grid_spec=pltpu.PrefetchScalarGridSpec(
            num_scalar_prefetch=0,
            grid=grid,
            in_specs=[
                pl.BlockSpec((bB, S, C), lambda b: (b, 0, 0)),   # x (full trailing dims, unpadded)
                pl.BlockSpec((S, 1), lambda b: (0, 0)),          # BN scale (per time step)
                pl.BlockSpec((S, 1), lambda b: (0, 0)),          # BN shift
                pl.BlockSpec((C, C), lambda b: (0, 0)),          # fc1 weight (in, out)
                pl.BlockSpec((1, C), lambda b: (0, 0)),          # fc1 bias
                pl.BlockSpec((C, C), lambda b: (0, 0)),          # fc2 weight (in, out)
                pl.BlockSpec((1, C), lambda b: (0, 0)),          # fc2 bias
                pl.BlockSpec((P, S), lambda b: (0, 0)),          # temp_proj weight (P, S)
                pl.BlockSpec((P, 1), lambda b: (0, 0)),          # temp_proj bias
            ],
            out_specs=pl.BlockSpec((bB, P, C), lambda b: (b, 0, 0)),
        ),
        compiler_params=pltpu.CompilerParams(
            dimension_semantics=("parallel",),
            vmem_limit_bytes=64 * 1024 * 1024,
        ),
        cost_estimate=pl.CostEstimate(flops=int(flops), transcendentals=0,
                                      bytes_accessed=int(bytes_accessed)),
    )(xf, scale, shift, w1t, b1, w2t, b2, wp, bp)

    return out


def backbone_ref(x, p):
    """Pure-JAX reference (mirrors the PyTorch forward)."""
    mean = x.mean(axis=(0, 2), keepdims=True)
    var = ((x - mean) ** 2).mean(axis=(0, 2), keepdims=True)
    xn = (x - mean) / jnp.sqrt(var + BN_EPS) * p['gamma'][None, :, None] + p['beta'][None, :, None]
    h = jnp.maximum(xn @ p['w1'].T + p['b1'], 0.0)
    y = h @ p['w2'].T + p['b2'] + x
    yt = jnp.swapaxes(y, 1, 2)                 # (B, C, S)
    out = yt @ p['wp'].T + p['bp']             # (B, C, P)
    return jnp.swapaxes(out, 1, 2)             # (B, P, C)


def init_params(key, seq_len, enc_in, pred_len):
    ks = jax.random.split(key, 8)
    u = lambda k, s: jax.random.uniform(k, s, jnp.float32, -0.3, 0.3)
    return {
        # BatchNorm1d affine params (per time step)
        'gamma': 1.0 + 0.1 * u(ks[0], (seq_len,)),
        'beta': 0.1 * u(ks[1], (seq_len,)),
        # Mlp_feat fc1 / fc2 (PyTorch layout: (out_features, in_features))
        'w1': u(ks[2], (enc_in, enc_in)),
        'b1': u(ks[3], (enc_in,)),
        'w2': u(ks[4], (enc_in, enc_in)),
        'b2': u(ks[5], (enc_in,)),
        # temp_proj: Linear(seq_len -> pred_len)
        'wp': u(ks[6], (pred_len, seq_len)),
        'bp': u(ks[7], (pred_len,)),
    }
    # TODO(synk): self.gru / self.d_model and MLP_time are defined in Backbone.__init__
    # but never used in forward, so they are intentionally omitted.


if __name__ == "__main__":
    B, seq_len, enc_in, pred_len = 2, 8, 4, 12

    key = jax.random.PRNGKey(0)
    kx, kp = jax.random.split(key)
    x = jax.random.normal(kx, (B, seq_len, enc_in), jnp.float32)
    params = init_params(kp, seq_len, enc_in, pred_len)

    out = jax.block_until_ready(backbone_forward(x, params))

    ref = backbone_ref(x, params)
    np.testing.assert_allclose(np.asarray(out), np.asarray(ref), rtol=1e-4, atol=1e-4)
    assert out.shape == (B, pred_len, enc_in)
    print("KERNEL_OK")
</pallas_src>

<mosaic_0001>
module attributes {stable_mosaic.version = 11 : i64} {
  func.func @backbone_kernel(%arg0: i32, %arg1: memref<1x8x4xf32, #tpu.memory_space<vmem>>, %arg2: memref<8x1xf32, #tpu.memory_space<vmem>>, %arg3: memref<8x1xf32, #tpu.memory_space<vmem>>, %arg4: memref<4x4xf32, #tpu.memory_space<vmem>>, %arg5: memref<1x4xf32, #tpu.memory_space<vmem>>, %arg6: memref<4x4xf32, #tpu.memory_space<vmem>>, %arg7: memref<1x4xf32, #tpu.memory_space<vmem>>, %arg8: memref<12x8xf32, #tpu.memory_space<vmem>>, %arg9: memref<12x1xf32, #tpu.memory_space<vmem>>, %arg10: memref<1x12x4xf32, #tpu.memory_space<vmem>>) attributes {dimension_semantics = [#tpu.dimension_semantics<parallel>], iteration_bounds = array<i64: 2>, scalar_prefetch = 0 : i64, scratch_operands = 0 : i64, tpu.core_type = #tpu.core_type<tc>, window_params = [{transform_indices = @transform_0, window_bounds = array<i64: 1, 8, 4>}, {pipeline_mode = #tpu.pipeline_mode<synchronous>, transform_indices = @transform_1, window_bounds = array<i64: 8, 1>}, {pipeline_mode = #tpu.pipeline_mode<synchronous>, transform_indices = @transform_2, window_bounds = array<i64: 8, 1>}, {pipeline_mode = #tpu.pipeline_mode<synchronous>, transform_indices = @transform_3, window_bounds = array<i64: 4, 4>}, {pipeline_mode = #tpu.pipeline_mode<synchronous>, transform_indices = @transform_4, window_bounds = array<i64: 1, 4>}, {pipeline_mode = #tpu.pipeline_mode<synchronous>, transform_indices = @transform_5, window_bounds = array<i64: 4, 4>}, {pipeline_mode = #tpu.pipeline_mode<synchronous>, transform_indices = @transform_6, window_bounds = array<i64: 1, 4>}, {pipeline_mode = #tpu.pipeline_mode<synchronous>, transform_indices = @transform_7, window_bounds = array<i64: 12, 8>}, {pipeline_mode = #tpu.pipeline_mode<synchronous>, transform_indices = @transform_8, window_bounds = array<i64: 12, 1>}, {transform_indices = @transform_9, window_bounds = array<i64: 1, 12, 4>}]} {
    %c0 = arith.constant 0 : index
    %c0_0 = arith.constant 0 : index
    %c0_1 = arith.constant 0 : index
    %0 = vector.load %arg1[%c0, %c0_0, %c0_1] : memref<1x8x4xf32, #tpu.memory_space<vmem>>, vector<1x8x4xf32>
    %c0_2 = arith.constant 0 : index
    %c0_3 = arith.constant 0 : index
    %1 = vector.load %arg2[%c0_2, %c0_3] : memref<8x1xf32, #tpu.memory_space<vmem>>, vector<8x1xf32>
    %2 = vector.shape_cast %1 : vector<8x1xf32> to vector<1x8x1xf32>
    %3 = vector.broadcast %2 : vector<1x8x1xf32> to vector<1x8x4xf32>
    %4 = arith.mulf %0, %3 : vector<1x8x4xf32>
    %c0_4 = arith.constant 0 : index
    %c0_5 = arith.constant 0 : index
    %5 = vector.load %arg3[%c0_4, %c0_5] : memref<8x1xf32, #tpu.memory_space<vmem>>, vector<8x1xf32>
    %6 = vector.shape_cast %5 : vector<8x1xf32> to vector<1x8x1xf32>
    %7 = vector.broadcast %6 : vector<1x8x1xf32> to vector<1x8x4xf32>
    %8 = arith.addf %4, %7 : vector<1x8x4xf32>
    %9 = vector.shape_cast %8 : vector<1x8x4xf32> to vector<8x4xf32>
    %c0_6 = arith.constant 0 : index
    %c0_7 = arith.constant 0 : index
    %10 = vector.load %arg4[%c0_6, %c0_7] : memref<4x4xf32, #tpu.memory_space<vmem>>, vector<4x4xf32>
    %cst = arith.constant dense<0.000000e+00> : vector<8x4xf32>
    %11 = tpu.matmul %9, %10, %cst {dimension_numbers = #tpu.dot_dimension_numbers<[1], [0], [0], [1], [0, 0, 1, 1], [], []>} : vector<8x4xf32>, vector<4x4xf32>, vector<8x4xf32> -> vector<8x4xf32>
    %c0_8 = arith.constant 0 : index
    %c0_9 = arith.constant 0 : index
    %12 = vector.load %arg5[%c0_8, %c0_9] : memref<1x4xf32, #tpu.memory_space<vmem>>, vector<1x4xf32>
    %13 = vector.broadcast %12 : vector<1x4xf32> to vector<8x4xf32>
    %14 = arith.addf %11, %13 : vector<8x4xf32>
    %cst_10 = arith.constant 0.000000e+00 : f32
    %15 = vector.broadcast %cst_10 : f32 to vector<8x4xf32>
    %16 = arith.maximumf %14, %15 : vector<8x4xf32>
    %c0_11 = arith.constant 0 : index
    %c0_12 = arith.constant 0 : index
    %17 = vector.load %arg6[%c0_11, %c0_12] : memref<4x4xf32, #tpu.memory_space<vmem>>, vector<4x4xf32>
    %cst_13 = arith.constant dense<0.000000e+00> : vector<8x4xf32>
    %18 = tpu.matmul %16, %17, %cst_13 {dimension_numbers = #tpu.dot_dimension_numbers<[1], [0], [0], [1], [0, 0, 1, 1], [], []>} : vector<8x4xf32>, vector<4x4xf32>, vector<8x4xf32> -> vector<8x4xf32>
    %c0_14 = arith.constant 0 : index
    %c0_15 = arith.constant 0 : index
    %19 = vector.load %arg7[%c0_14, %c0_15] : memref<1x4xf32, #tpu.memory_space<vmem>>, vector<1x4xf32>
    %20 = vector.broadcast %19 : vector<1x4xf32> to vector<8x4xf32>
    %21 = arith.addf %18, %20 : vector<8x4xf32>
    %22 = vector.shape_cast %0 : vector<1x8x4xf32> to vector<8x4xf32>
    %23 = arith.addf %21, %22 : vector<8x4xf32>
    %24 = vector.shape_cast %23 : vector<8x4xf32> to vector<1x8x4xf32>
    %c0_16 = arith.constant 0 : index
    %c0_17 = arith.constant 0 : index
    %25 = vector.load %arg8[%c0_16, %c0_17] : memref<12x8xf32, #tpu.memory_space<vmem>>, vector<12x8xf32>
    %26 = vector.shape_cast %25 : vector<12x8xf32> to vector<1x12x8xf32>
    "tpu.trace_start"() <{level = 10 : i32, message = "bps,bsc->bpc"}> : () -> ()
    %cst_18 = arith.constant dense<0.000000e+00> : vector<1x12x4xf32>
    %27 = tpu.matmul %26, %24, %cst_18 {dimension_numbers = #tpu.dot_dimension_numbers<[2], [1], [1], [2], [0, 0, 0, 1, 1, 2], [0], [0]>} : vector<1x12x8xf32>, vector<1x8x4xf32>, vector<1x12x4xf32> -> vector<1x12x4xf32>
    "tpu.trace_stop"() : () -> ()
    %c0_19 = arith.constant 0 : index
    %c0_20 = arith.constant 0 : index
    %28 = vector.load %arg9[%c0_19, %c0_20] : memref<12x1xf32, #tpu.memory_space<vmem>>, vector<12x1xf32>
    %29 = vector.shape_cast %28 : vector<12x1xf32> to vector<1x12x1xf32>
    %30 = vector.broadcast %29 : vector<1x12x1xf32> to vector<1x12x4xf32>
    %31 = arith.addf %27, %30 : vector<1x12x4xf32>
    %c0_21 = arith.constant 0 : index
    %c0_22 = arith.constant 0 : index
    %c0_23 = arith.constant 0 : index
    %32 = vector.load %arg10[%c0_21, %c0_22, %c0_23] : memref<1x12x4xf32, #tpu.memory_space<vmem>>, vector<1x12x4xf32>
    tpu.vector_store %arg10[%c0_21, %c0_22, %c0_23], %31 {strides = array<i32>} : memref<1x12x4xf32, #tpu.memory_space<vmem>>, vector<1x12x4xf32>,
    return
  }
  func.func @transform_0(%arg0: i32) -> (i32, i32, i32) {
    %c0_i32 = arith.constant 0 : i32
    %c0_i32_0 = arith.constant 0 : i32
    %c0_i32_1 = arith.constant 0 : i32
    return %arg0, %c0_i32, %c0_i32_0 : i32, i32, i32
  }
  func.func @transform_1(%arg0: i32) -> (i32, i32) {
    %c0_i32 = arith.constant 0 : i32
    %c0_i32_0 = arith.constant 0 : i32
    %c0_i32_1 = arith.constant 0 : i32
    return %c0_i32, %c0_i32_0 : i32, i32
  }
  func.func @transform_2(%arg0: i32) -> (i32, i32) {
    %c0_i32 = arith.constant 0 : i32
    %c0_i32_0 = arith.constant 0 : i32
    %c0_i32_1 = arith.constant 0 : i32
    return %c0_i32, %c0_i32_0 : i32, i32
  }
  func.func @transform_3(%arg0: i32) -> (i32, i32) {
    %c0_i32 = arith.constant 0 : i32
    %c0_i32_0 = arith.constant 0 : i32
    %c0_i32_1 = arith.constant 0 : i32
    return %c0_i32, %c0_i32_0 : i32, i32
  }
  func.func @transform_4(%arg0: i32) -> (i32, i32) {
    %c0_i32 = arith.constant 0 : i32
    %c0_i32_0 = arith.constant 0 : i32
    %c0_i32_1 = arith.constant 0 : i32
    return %c0_i32, %c0_i32_0 : i32, i32
  }
  func.func @transform_5(%arg0: i32) -> (i32, i32) {
    %c0_i32 = arith.constant 0 : i32
    %c0_i32_0 = arith.constant 0 : i32
    %c0_i32_1 = arith.constant 0 : i32
    return %c0_i32, %c0_i32_0 : i32, i32
  }
  func.func @transform_6(%arg0: i32) -> (i32, i32) {
    %c0_i32 = arith.constant 0 : i32
    %c0_i32_0 = arith.constant 0 : i32
    %c0_i32_1 = arith.constant 0 : i32
    return %c0_i32, %c0_i32_0 : i32, i32
  }
  func.func @transform_7(%arg0: i32) -> (i32, i32) {
    %c0_i32 = arith.constant 0 : i32
    %c0_i32_0 = arith.constant 0 : i32
    %c0_i32_1 = arith.constant 0 : i32
    return %c0_i32, %c0_i32_0 : i32, i32
  }
  func.func @transform_8(%arg0: i32) -> (i32, i32) {
    %c0_i32 = arith.constant 0 : i32
    %c0_i32_0 = arith.constant 0 : i32
    %c0_i32_1 = arith.constant 0 : i32
    return %c0_i32, %c0_i32_0 : i32, i32
  }
  func.func @transform_9(%arg0: i32) -> (i32, i32, i32) {
    %c0_i32 = arith.constant 0 : i32
    %c0_i32_0 = arith.constant 0 : i32
    %c0_i32_1 = arith.constant 0 : i32
    return %arg0, %c0_i32, %c0_i32_0 : i32, i32, i32
  }
}

</mosaic_0001>

<llo_original>
// kernel: backbone_forward.1
$region0: #{backbone_forward.1}
  #allocation0 [shape = 'u32[]', space=smem, size = 0x4, offset = 0x4, fixed_abs, tag = 'smem constant byte address 0x4 - core index']
  #allocation1 [shape = 'u32[144,128]{1,0:T(1,128)}', space=vmem, size = 0x12000, scoped, tag = 'internal scratch']
  %s0 = inlined_call_operand.hbm [shape: f32[2,8,4], index: 0, kind: input, shape index: {}]
  %s1 = inlined_call_operand.hbm [shape: f32[8,1], index: 1, kind: input, shape index: {}]
  %s2 = inlined_call_operand.hbm [shape: f32[8,1], index: 2, kind: input, shape index: {}]
  %s3 = inlined_call_operand.hbm [shape: f32[4,4], index: 3, kind: input, shape index: {}]
  %s4 = inlined_call_operand.hbm [shape: f32[1,4], index: 4, kind: input, shape index: {}]
  %s5 = inlined_call_operand.hbm [shape: f32[4,4], index: 5, kind: input, shape index: {}]
  %s6 = inlined_call_operand.hbm [shape: f32[1,4], index: 6, kind: input, shape index: {}]
  %s7 = inlined_call_operand.hbm [shape: f32[12,8], index: 7, kind: input, shape index: {}]
  %s8 = inlined_call_operand.hbm [shape: f32[12,1], index: 8, kind: input, shape index: {}]
  %s9 = inlined_call_operand.hbm [shape: f32[2,12,4], index: 9, kind: output, shape index: {}]
  %s10 = sld [smem:[#allocation0]]
  $region105: #{backbone_forward.1} parent=0
    _
  %s12 = ssub.s32 1, %s10
  %s13 = scalar_select 0, %s12, %s10
  $region1: #{backbone_forward.1} parent=0
    #allocation2 [shape = 'u8[8192]{0}', space=vmem, size = 0x2000, scoped, tag = 'input window, operand 0']
    #allocation3 [shape = 's32[2]{0}', space=sflag, size = 0x8, scoped, tag = 'scoped memory for backbone_forward.1']
    #allocation4 [shape = 's32[2]{0}', space=sflag, size = 0x8, scoped, tag = 'scoped memory for backbone_forward.1']
    #allocation5 [shape = 'u8[4096]{0}', space=vmem, size = 0x1000, scoped, tag = 'input window, operand 1, single buffered']
    #allocation6 [shape = 's32[1]{0}', space=sflag, size = 0x4, scoped, tag = 'scoped memory for backbone_forward.1']
    #allocation7 [shape = 'u8[4096]{0}', space=vmem, size = 0x1000, scoped, tag = 'input window, operand 2, single buffered']
    #allocation8 [shape = 'u8[2048]{0}', space=vmem, size = 0x800, scoped, tag = 'input window, operand 3, single buffered']
    #allocation9 [shape = 's32[1]{0}', space=sflag, size = 0x4, scoped, tag = 'scoped memory for backbone_forward.1']
    #allocation10 [shape = 'u8[512]{0}', space=vmem, size = 0x400, scoped, tag = 'input window, operand 4, single buffered']
    #allocation11 [shape = 'u8[2048]{0}', space=vmem, size = 0x800, scoped, tag = 'input window, operand 5, single buffered']
    #allocation12 [shape = 's32[1]{0}', space=sflag, size = 0x4, scoped, tag = 'scoped memory for backbone_forward.1']
    #allocation13 [shape = 'u8[512]{0}', space=vmem, size = 0x400, scoped, tag = 'input window, operand 6, single buffered']
    #allocation14 [shape = 'u8[8192]{0}', space=vmem, size = 0x2000, scoped, tag = 'input window, operand 7, single buffered']
    #allocation15 [shape = 's32[1]{0}', space=sflag, size = 0x4, scoped, tag = 'scoped memory for backbone_forward.1']
    #allocation16 [shape = 'u8[8192]{0}', space=vmem, size = 0x2000, scoped, tag = 'input window, operand 8, single buffered']
    #allocation17 [shape = 'u8[16384]{0}', space=vmem, size = 0x4000, scoped, tag = 'output window, operand 0']
    %14 = vsyncpa [#allocation3], 0
    %s15 = scalar_lea.sflag [#allocation3], 1
    %16 = vsyncpa %s15, 0
    %17 = vsyncpa [#allocation6], 0
    %18 = vsyncpa [#allocation9], 0
    %19 = vsyncpa [#allocation12], 0
    %20 = vsyncpa [#allocation15], 0
    %21 = vsyncpa [#allocation4], 0
    %s22 = scalar_lea.sflag [#allocation4], 1
    %23 = vsyncpa %s22, 0
    loop: start=0, step=1, limit=4
    $region2: #{backbone_forward.1} parent=1 // loop_pre_header
      _
    $region3: #{backbone_forward.1} parent=1 // loop_header
      %s25 = sphi 0, %s29
      %p26 = scmp.ge.s32.totalorder %s25, 4
      %s35 = sphi 0, %s37
      %s38 = sphi 0, %s35
      %s39 = sphi 0, %s38
      %s55 = sphi 0, %s39
      %s59 = sphi 0, %s59
      %s61 = sphi 0, %s59
      %s62 = sphi 0, %s61
      %s76 = sphi 0, %s62
      %s80 = sphi 0, %s80
      %s82 = sphi 0, %s80
      %s83 = sphi 0, %s82
      %s97 = sphi 0, %s83
      %s101 = sphi 0, %s101
      %s103 = sphi 0, %s101
      %s104 = sphi 0, %s103
      %s118 = sphi 0, %s104
      %s122 = sphi 0, %s122
      %s124 = sphi 0, %s122
      %s125 = sphi 0, %s124
      %s139 = sphi 0, %s125
      %s143 = sphi 0, %s143
      %s145 = sphi 0, %s143
      %s146 = sphi 0, %s145
      %s160 = sphi 0, %s146
      %s164 = sphi 0, %s164
      %s166 = sphi 0, %s164
      %s167 = sphi 0, %s166
      %s181 = sphi 0, %s167
      %s185 = sphi 0, %s185
      %s187 = sphi 0, %s185
      %s188 = sphi 0, %s187
      %s202 = sphi 0, %s188
      %s206 = sphi 0, %s206
      %s208 = sphi 0, %s206
      %s209 = sphi 0, %s208
      %s223 = sphi 0, %s209
      %s229 = sphi 0, %s231
      %s232 = sphi 0, %s229
      %s233 = sphi 0, %s232
      %s249 = sphi 0, %s233
    $region4: #{backbone_forward.1} parent=1 // loop_header_branch
      %28 = sbr.rel (%p26) target = $region8
    $region5: #{backbone_forward.1} parent=1 // loop_body
      %s30 = ssub.s32 %s25, 1
      %s31 = ssub.s32 %s25, 2
      %s32 = sadd.s32 %s25, 1
      %s33 = ssub.s32 %s25, %s32
      %p34 = scmp.eq.s32.totalorder %s33, 0
      %s36 = sadd.s32 %s35, 1
      %s37 = scalar_select %p34, %s35, %s36
      %p40 = pneg %p34
      %p41 = scmp.eq.s32.totalorder %s25, 1
      %p42 = por %p40, %p41
      %p43 = scmp.ne.s32.totalorder %s35, %s38
      %p44 = scmp.eq.s32.totalorder %s25, 0
      %p45 = por %p43, %p44
      %p46 = scmp.ne.s32.totalorder %s35, %s38
      %p47 = scmp.eq.s32.totalorder %s30, 1
      %p48 = por %p46, %p47
      %p49 = scmp.ne.s32.totalorder %s38, %s39
      %p50 = scmp.eq.s32.totalorder %s30, 0
      %p51 = por %p49, %p50
      %p52 = scmp.ne.s32.totalorder %s38, %s39
      %p53 = scmp.eq.s32.totalorder %s31, 1
      %p54 = por %p52, %p53
      %p56 = scmp.ne.s32.totalorder %s39, %s55
      %p57 = scmp.eq.s32.totalorder %s31, 0
      %p58 = por %p56, %p57
      %s60 = sadd.s32 %s59, 1
      %p63 = scmp.eq.s32.totalorder %s25, 1
      %p64 = scmp.ne.s32.totalorder %s59, %s61
      %p65 = scmp.eq.s32.totalorder %s25, 0
      %p66 = por %p64, %p65
      %p67 = scmp.ne.s32.totalorder %s59, %s61
      %p68 = scmp.eq.s32.totalorder %s30, 1
      %p69 = por %p67, %p68
      %p70 = scmp.ne.s32.totalorder %s61, %s62
      %p71 = scmp.eq.s32.totalorder %s30, 0
      %p72 = por %p70, %p71
      %p73 = scmp.ne.s32.totalorder %s61, %s62
      %p74 = scmp.eq.s32.totalorder %s31, 1
      %p75 = por %p73, %p74
      %p77 = scmp.ne.s32.totalorder %s62, %s76
      %p78 = scmp.eq.s32.totalorder %s31, 0
      %p79 = por %p77, %p78
      %s81 = sadd.s32 %s80, 1
      %p84 = scmp.eq.s32.totalorder %s25, 1
      %p85 = scmp.ne.s32.totalorder %s80, %s82
      %p86 = scmp.eq.s32.totalorder %s25, 0
      %p87 = por %p85, %p86
      %p88 = scmp.ne.s32.totalorder %s80, %s82
      %p89 = scmp.eq.s32.totalorder %s30, 1
      %p90 = por %p88, %p89
      %p91 = scmp.ne.s32.totalorder %s82, %s83
      %p92 = scmp.eq.s32.totalorder %s30, 0
      %p93 = por %p91, %p92
      %p94 = scmp.ne.s32.totalorder %s82, %s83
      %p95 = scmp.eq.s32.totalorder %s31, 1
      %p96 = por %p94, %p95
      %p98 = scmp.ne.s32.totalorder %s83, %s97
      %p99 = scmp.eq.s32.totalorder %s31, 0
      %p100 = por %p98, %p99
      %s102 = sadd.s32 %s101, 1
      %p105 = scmp.eq.s32.totalorder %s25, 1
      %p106 = scmp.ne.s32.totalorder %s101, %s103
      %p107 = scmp.eq.s32.totalorder %s25, 0
      %p108 = por %p106, %p107
      %p109 = scmp.ne.s32.totalorder %s101, %s103
      %p110 = scmp.eq.s32.totalorder %s30, 1
      %p111 = por %p109, %p110
      %p112 = scmp.ne.s32.totalorder %s103, %s104
      %p113 = scmp.eq.s32.totalorder %s30, 0
      %p114 = por %p112, %p113
      %p115 = scmp.ne.s32.totalorder %s103, %s104
      %p116 = scmp.eq.s32.totalorder %s31, 1
      %p117 = por %p115, %p116
      %p119 = scmp.ne.s32.totalorder %s104, %s118
      %p120 = scmp.eq.s32.totalorder %s31, 0
      %p121 = por %p119, %p120
      %s123 = sadd.s32 %s122, 1
      %p126 = scmp.eq.s32.totalorder %s25, 1
      %p127 = scmp.ne.s32.totalorder %s122, %s124
      %p128 = scmp.eq.s32.totalorder %s25, 0
      %p129 = por %p127, %p128
      %p130 = scmp.ne.s32.totalorder %s122, %s124
      %p131 = scmp.eq.s32.totalorder %s30, 1
      %p132 = por %p130, %p131
      %p133 = scmp.ne.s32.totalorder %s124, %s125
      %p134 = scmp.eq.s32.totalorder %s30, 0
      %p135 = por %p133, %p134
      %p136 = scmp.ne.s32.totalorder %s124, %s125
      %p137 = scmp.eq.s32.totalorder %s31, 1
      %p138 = por %p136, %p137
      %p140 = scmp.ne.s32.totalorder %s125, %s139
      %p141 = scmp.eq.s32.totalorder %s31, 0
      %p142 = por %p140, %p141
      %s144 = sadd.s32 %s143, 1
      %p147 = scmp.eq.s32.totalorder %s25, 1
      %p148 = scmp.ne.s32.totalorder %s143, %s145
      %p149 = scmp.eq.s32.totalorder %s25, 0
      %p150 = por %p148, %p149
      %p151 = scmp.ne.s32.totalorder %s143, %s145
      %p152 = scmp.eq.s32.totalorder %s30, 1
      %p153 = por %p151, %p152
      %p154 = scmp.ne.s32.totalorder %s145, %s146
      %p155 = scmp.eq.s32.totalorder %s30, 0
      %p156 = por %p154, %p155
      %p157 = scmp.ne.s32.totalorder %s145, %s146
      %p158 = scmp.eq.s32.totalorder %s31, 1
      %p159 = por %p157, %p158
      %p161 = scmp.ne.s32.totalorder %s146, %s160
      %p162 = scmp.eq.s32.totalorder %s31, 0
      %p163 = por %p161, %p162
      %s165 = sadd.s32 %s164, 1
      %p168 = scmp.eq.s32.totalorder %s25, 1
      %p169 = scmp.ne.s32.totalorder %s164, %s166
      %p170 = scmp.eq.s32.totalorder %s25, 0
      %p171 = por %p169, %p170
      %p172 = scmp.ne.s32.totalorder %s164, %s166
      %p173 = scmp.eq.s32.totalorder %s30, 1
      %p174 = por %p172, %p173
      %p175 = scmp.ne.s32.totalorder %s166, %s167
      %p176 = scmp.eq.s32.totalorder %s30, 0
      %p177 = por %p175, %p176
      %p178 = scmp.ne.s32.totalorder %s166, %s167
      %p179 = scmp.eq.s32.totalorder %s31, 1
      %p180 = por %p178, %p179
      %p182 = scmp.ne.s32.totalorder %s167, %s181
      %p183 = scmp.eq.s32.totalorder %s31, 0
      %p184 = por %p182, %p183
      %s186 = sadd.s32 %s185, 1
      %p189 = scmp.eq.s32.totalorder %s25, 1
      %p190 = scmp.ne.s32.totalorder %s185, %s187
      %p191 = scmp.eq.s32.totalorder %s25, 0
      %p192 = por %p190, %p191
      %p193 = scmp.ne.s32.totalorder %s185, %s187
      %p194 = scmp.eq.s32.totalorder %s30, 1
      %p195 = por %p193, %p194
      %p196 = scmp.ne.s32.totalorder %s187, %s188
      %p197 = scmp.eq.s32.totalorder %s30, 0
      %p198 = por %p196, %p197
      %p199 = scmp.ne.s32.totalorder %s187, %s188
      %p200 = scmp.eq.s32.totalorder %s31, 1
      %p201 = por %p199, %p200
      %p203 = scmp.ne.s32.totalorder %s188, %s202
      %p204 = scmp.eq.s32.totalorder %s31, 0
      %p205 = por %p203, %p204
      %s207 = sadd.s32 %s206, 1
      %p210 = scmp.eq.s32.totalorder %s25, 1
      %p211 = scmp.ne.s32.totalorder %s206, %s208
      %p212 = scmp.eq.s32.totalorder %s25, 0
      %p213 = por %p211, %p212
      %p214 = scmp.ne.s32.totalorder %s206, %s208
      %p215 = scmp.eq.s32.totalorder %s30, 1
      %p216 = por %p214, %p215
      %p217 = scmp.ne.s32.totalorder %s208, %s209
      %p218 = scmp.eq.s32.totalorder %s30, 0
      %p219 = por %p217, %p218
      %p220 = scmp.ne.s32.totalorder %s208, %s209
      %p221 = scmp.eq.s32.totalorder %s31, 1
      %p222 = por %p220, %p221
      %p224 = scmp.ne.s32.totalorder %s209, %s223
      %p225 = scmp.eq.s32.totalorder %s31, 0
      %p226 = por %p224, %p225
      %s227 = ssub.s32 %s25, %s32
      %p228 = scmp.eq.s32.totalorder %s227, 0
      %s230 = sadd.s32 %s229, 1
      %s231 = scalar_select %p228, %s229, %s230
      %p234 = pneg %p228
      %p235 = scmp.eq.s32.totalorder %s25, 1
      %p236 = por %p234, %p235
      %p237 = scmp.ne.s32.totalorder %s229, %s232
      %p238 = scmp.eq.s32.totalorder %s25, 0
      %p239 = por %p237, %p238
      %p240 = scmp.ne.s32.totalorder %s229, %s232
      %p241 = scmp.eq.s32.totalorder %s30, 1
      %p242 = por %p240, %p241
      %p243 = scmp.ne.s32.totalorder %s232, %s233
      %p244 = scmp.eq.s32.totalorder %s30, 0
      %p245 = por %p243, %p244
      %p246 = scmp.ne.s32.totalorder %s232, %s233
      %p247 = scmp.eq.s32.totalorder %s31, 1
      %p248 = por %p246, %p247
      %p250 = scmp.ne.s32.totalorder %s233, %s249
      %p251 = scmp.eq.s32.totalorder %s31, 0
      %p252 = por %p250, %p251
      %p253 = scmp.le.s32.totalorder 1, %s25
      %p254 = scmp.lt.s32.totalorder %s25, 3
      %p255 = pnand %p253, %p254
      %p256 = pneg %p255
      // Predicated region
      $region9: #{backbone_forward.1} parent=5 // pred_check
        _
      $region10: #{backbone_forward.1} parent=5 // pred_check_branch
        %258 = sbr.rel (%p255) target = $region12
      $region11: #{backbone_forward.1} parent=5 // pred_region
        %s259 = ssub.s32 %s25, 1
        // Predicated region
        $region13: #{backbone_forward.1} parent=11 // pred_check
          %p260 = pneg %p72
        $region14: #{backbone_forward.1} parent=11 // pred_check_branch
          %262 = sbr.rel (%p260) target = $region16
        $region15: #{backbone_forward.1} parent=11 // pred_region
          %s264 = ssub.s32 128, 128
          %265 = vsyncadd [#allocation6], %s264
          %s267 = sshll.u32 [#allocation5], 4
          %s268 = int_to_ptr.vmem [resolvable:$true] %s267
          %270 = dma.hbm_to_vmem [thread:$0]  %s1, 128, %s268, [#allocation6]
        $region16: #{backbone_forward.1} parent=11 // pred_fallthru
          _
        // Predicated region
        $region17: #{backbone_forward.1} parent=11 // pred_check
          %p271 = pneg %p93
        $region18: #{backbone_forward.1} parent=11 // pred_check_branch
          %273 = sbr.rel (%p271) target = $region20
        $region19: #{backbone_forward.1} parent=11 // pred_region
          %s275 = ssub.s32 128, 128
          %276 = vsyncadd [#allocation6], %s275
          %s278 = sshll.u32 [#allocation7], 4
          %s279 = int_to_ptr.vmem [resolvable:$true] %s278
          %281 = dma.hbm_to_vmem [thread:$0]  %s2, 128, %s279, [#allocation6]
        $region20: #{backbone_forward.1} parent=11 // pred_fallthru
          _
        // Predicated region
        $region21: #{backbone_forward.1} parent=11 // pred_check
          %p282 = pneg %p114
        $region22: #{backbone_forward.1} parent=11 // pred_check_branch
          %284 = sbr.rel (%p282) target = $region24
        $region23: #{backbone_forward.1} parent=11 // pred_region
          %s286 = ssub.s32 64, 64
          %287 = vsyncadd [#allocation9], %s286
          %s289 = sshll.u32 [#allocation8], 4
          %s290 = int_to_ptr.vmem [resolvable:$true] %s289
          %292 = dma.hbm_to_vmem [thread:$0]  %s3, 64, %s290, [#allocation9]
        $region24: #{backbone_forward.1} parent=11 // pred_fallthru
          _
        // Predicated region
        $region25: #{backbone_forward.1} parent=11 // pred_check
          %p293 = pneg %p135
        $region26: #{backbone_forward.1} parent=11 // pred_check_branch
          %295 = sbr.rel (%p293) target = $region28
        $region27: #{backbone_forward.1} parent=11 // pred_region
          %s297 = ssub.s32 16, 16
          %298 = vsyncadd [#allocation9], %s297
          %s300 = sshll.u32 [#allocation10], 4
          %s301 = int_to_ptr.vmem [resolvable:$true] %s300
          %303 = dma.hbm_to_vmem [thread:$0]  %s4, 16, %s301, [#allocation9]
        $region28: #{backbone_forward.1} parent=11 // pred_fallthru
          _
        // Predicated region
        $region29: #{backbone_forward.1} parent=11 // pred_check
          %p304 = pneg %p156
        $region30: #{backbone_forward.1} parent=11 // pred_check_branch
          %306 = sbr.rel (%p304) target = $region32
        $region31: #{backbone_forward.1} parent=11 // pred_region
          %s308 = ssub.s32 64, 64
          %309 = vsyncadd [#allocation12], %s308
          %s311 = sshll.u32 [#allocation11], 4
          %s312 = int_to_ptr.vmem [resolvable:$true] %s311
          %314 = dma.hbm_to_vmem [thread:$0]  %s5, 64, %s312, [#allocation12]
        $region32: #{backbone_forward.1} parent=11 // pred_fallthru
          _
        // Predicated region
        $region33: #{backbone_forward.1} parent=11 // pred_check
          %p315 = pneg %p177
        $region34: #{backbone_forward.1} parent=11 // pred_check_branch
          %317 = sbr.rel (%p315) target = $region36
        $region35: #{backbone_forward.1} parent=11 // pred_region
          %s319 = ssub.s32 16, 16
          %320 = vsyncadd [#allocation12], %s319
          %s322 = sshll.u32 [#allocation13], 4
          %s323 = int_to_ptr.vmem [resolvable:$true] %s322
          %325 = dma.hbm_to_vmem [thread:$0]  %s6, 16, %s323, [#allocation12]
        $region36: #{backbone_forward.1} parent=11 // pred_fallthru
          _
        // Predicated region
        $region37: #{backbone_forward.1} parent=11 // pred_check
          %p326 = pneg %p198
        $region38: #{backbone_forward.1} parent=11 // pred_check_branch
          %328 = sbr.rel (%p326) target = $region40
        $region39: #{backbone_forward.1} parent=11 // pred_region
          %s330 = ssub.s32 256, 256
          %331 = vsyncadd [#allocation15], %s330
          %s332 = sshll.u32 [#allocation14], 4
          %s333 = int_to_ptr.vmem [resolvable:$true] %s332
          %338 = dma.hbm_to_vmem [thread:$0]  %s7, 256, %s333, [#allocation15], 128, 128, 8
        $region40: #{backbone_forward.1} parent=11 // pred_fallthru
          _
        // Predicated region
        $region41: #{backbone_forward.1} parent=11 // pred_check
          %p339 = pneg %p219
        $region42: #{backbone_forward.1} parent=11 // pred_check_branch
          %341 = sbr.rel (%p339) target = $region44
        $region43: #{backbone_forward.1} parent=11 // pred_region
          %s343 = ssub.s32 256, 256
          %344 = vsyncadd [#allocation15], %s343
          %s345 = sshll.u32 [#allocation16], 4
          %s346 = int_to_ptr.vmem [resolvable:$true] %s345
          %351 = dma.hbm_to_vmem [thread:$0]  %s8, 256, %s346, [#allocation15], 128, 128, 8
        $region44: #{backbone_forward.1} parent=11 // pred_fallthru
          _
      $region12: #{backbone_forward.1} parent=5 // pred_fallthru
        _
      %p352 = scmp.lt.s32.totalorder %s25, 2
      // Predicated region
      $region45: #{backbone_forward.1} parent=5 // pred_check
        %p353 = pneg %p352
      $region46: #{backbone_forward.1} parent=5 // pred_check_branch
        %355 = sbr.rel (%p353) target = $region48
      $region47: #{backbone_forward.1} parent=5 // pred_region
        // Predicated region
        $region49: #{backbone_forward.1} parent=47 // pred_check
          %p356 = pneg %p45
        $region50: #{backbone_forward.1} parent=47 // pred_check_branch
          %358 = sbr.rel (%p356) target = $region52
        $region51: #{backbone_forward.1} parent=47 // pred_region
          %s359 = sand.u32 %s35, 1
          %s360 = scalar_lea.sflag [#allocation3], %s359
          %s361 = sand.u32 %s35, 1
          %s362 = smul.addr %s361, 8
          %s363 = scalar_lea.vmem [#allocation2], %s362
          %s365 = ssub.s32 128, 128
          %366 = vsyncadd %s360, %s365
          %s367 = smul.addr %s25, 128
          %s368 = scalar_lea.hbm %s0, %s367
          %s370 = sshll.u32 %s363, 4
          %s371 = int_to_ptr.vmem [resolvable:$true] %s370
          %373 = dma.hbm_to_vmem [thread:$0]  %s368, 128, %s371, %s360
        $region52: #{backbone_forward.1} parent=47 // pred_fallthru
          _
      $region48: #{backbone_forward.1} parent=5 // pred_fallthru
        _
      %p374 = scmp.le.s32.totalorder 1, %s25
      %p375 = scmp.lt.s32.totalorder %s25, 3
      %p376 = pnand %p374, %p375
      %p377 = pneg %p376
      // Predicated region
      $region53: #{backbone_forward.1} parent=5 // pred_check
        _
      $region54: #{backbone_forward.1} parent=5 // pred_check_branch
        %379 = sbr.rel (%p376) target = $region56
      $region55: #{backbone_forward.1} parent=5 // pred_region
        %s380 = ssub.s32 %s25, 1
        %s381 = sand.u32 %s38, 1
        %s382 = scalar_lea.sflag [#allocation3], %s381
        %s383 = sand.u32 %s38, 1
        %s384 = smul.addr %s383, 8
        %s385 = scalar_lea.vmem [#allocation2], %s384
        // Predicated region
        $region57: #{backbone_forward.1} parent=55 // pred_check
          %p386 = pneg %p51
        $region58: #{backbone_forward.1} parent=55 // pred_check_branch
          %388 = sbr.rel (%p386) target = $region60
        $region59: #{backbone_forward.1} parent=55 // pred_region
          %389 = dma.done %s382, 128
        $region60: #{backbone_forward.1} parent=55 // pred_fallthru
          _
        // Predicated region
        $region61: #{backbone_forward.1} parent=55 // pred_check
          %p390 = pneg %p72
        $region62: #{backbone_forward.1} parent=55 // pred_check_branch
          %392 = sbr.rel (%p390) target = $region64
        $region63: #{backbone_forward.1} parent=55 // pred_region
          %393 = dma.done [#allocation6], 128
        $region64: #{backbone_forward.1} parent=55 // pred_fallthru
          _
        // Predicated region
        $region65: #{backbone_forward.1} parent=55 // pred_check
          %p394 = pneg %p93
        $region66: #{backbone_forward.1} parent=55 // pred_check_branch
          %396 = sbr.rel (%p394) target = $region68
        $region67: #{backbone_forward.1} parent=55 // pred_region
          %397 = dma.done [#allocation6], 128
        $region68: #{backbone_forward.1} parent=55 // pred_fallthru
          _
        // Predicated region
        $region69: #{backbone_forward.1} parent=55 // pred_check
          %p398 = pneg %p114
        $region70: #{backbone_forward.1} parent=55 // pred_check_branch
          %400 = sbr.rel (%p398) target = $region72
        $region71: #{backbone_forward.1} parent=55 // pred_region
          %401 = dma.done [#allocation9], 64
        $region72: #{backbone_forward.1} parent=55 // pred_fallthru
          _
        // Predicated region
        $region73: #{backbone_forward.1} parent=55 // pred_check
          %p402 = pneg %p135
        $region74: #{backbone_forward.1} parent=55 // pred_check_branch
          %404 = sbr.rel (%p402) target = $region76
        $region75: #{backbone_forward.1} parent=55 // pred_region
          %405 = dma.done [#allocation9], 16
        $region76: #{backbone_forward.1} parent=55 // pred_fallthru
          _
        // Predicated region
        $region77: #{backbone_forward.1} parent=55 // pred_check
          %p406 = pneg %p156
        $region78: #{backbone_forward.1} parent=55 // pred_check_branch
          %408 = sbr.rel (%p406) target = $region80
        $region79: #{backbone_forward.1} parent=55 // pred_region
          %409 = dma.done [#allocation12], 64
        $region80: #{backbone_forward.1} parent=55 // pred_fallthru
          _
        // Predicated region
        $region81: #{backbone_forward.1} parent=55 // pred_check
          %p410 = pneg %p177
        $region82: #{backbone_forward.1} parent=55 // pred_check_branch
          %412 = sbr.rel (%p410) target = $region84
        $region83: #{backbone_forward.1} parent=55 // pred_region
          %413 = dma.done [#allocation12], 16
        $region84: #{backbone_forward.1} parent=55 // pred_fallthru
          _
        // Predicated region
        $region85: #{backbone_forward.1} parent=55 // pred_check
          %p414 = pneg %p198
        $region86: #{backbone_forward.1} parent=55 // pred_check_branch
          %416 = sbr.rel (%p414) target = $region88
        $region87: #{backbone_forward.1} parent=55 // pred_region
          %417 = dma.done [#allocation15], 256
        $region88: #{backbone_forward.1} parent=55 // pred_fallthru
          _
        // Predicated region
        $region89: #{backbone_forward.1} parent=55 // pred_check
          %p418 = pneg %p219
        $region90: #{backbone_forward.1} parent=55 // pred_check_branch
          %420 = sbr.rel (%p418) target = $region92
        $region91: #{backbone_forward.1} parent=55 // pred_region
          %421 = dma.done [#allocation15], 256
        $region92: #{backbone_forward.1} parent=55 // pred_fallthru
          _
        %s422 = sand.u32 %s38, 1
        %s423 = scalar_lea.sflag [#allocation3], %s422
        %s424 = sand.u32 %s38, 1
        %s425 = smul.addr %s424, 8
        %s426 = scalar_lea.vmem [#allocation2], %s425
        %p427 = pneg %p51
        %p428 = pneg %p48
        %p429 = pneg %p72
        %p430 = pneg %p69
        %p431 = pneg %p93
        %p432 = pneg %p90
        %p433 = pneg %p114
        %p434 = pneg %p111
        %p435 = pneg %p135
        %p436 = pneg %p132
        %p437 = pneg %p156
        %p438 = pneg %p153
        %p439 = pneg %p177
        %p440 = pneg %p174
        %p441 = pneg %p198
        %p442 = pneg %p195
        %p443 = pneg %p219
        %p444 = pneg %p216
        %p445 = pneg %p245
        %p446 = pneg %p242
        %s447 = sand.u32 %s232, 1
        %s448 = scalar_lea.sflag [#allocation4], %s447
        %s449 = sand.u32 %s232, 1
        %s450 = smul.addr %s449, 16
        %s451 = scalar_lea.vmem [#allocation17], %s450
        %v452 = vld [vmem:[%s385] sm:$0xff]
        %v453 = vld [vmem:[#allocation5] sm:$0xff]
        %455 = vset.pattern.permute.xlu0 0
        %456 = vperm.xlu0 %455, %v453
        %v457 = vpop.permute.xlu0 %456
        %v459 = vmul.f32 %v452, %v457
        %v460 = vld [vmem:[#allocation7] sm:$0xff]
        %462 = vset.pattern.permute.xlu0 0
        %463 = vperm.xlu0 %462, %v460
        %v464 = vpop.permute.xlu0 %463
        %v466 = vadd.f32 %v459, %v464
        %v467 = vld [vmem:[#allocation8] sm:$0xf]
        %v468 = vld [vmem:[#allocation10] sm:$0x1]
        %v470 = vlaneseq
        %v471 = vshrl.u32 %v470, 7
        %v472 = vsub.s32 0, %v471
        %v473 = vrot.slane %v468, %v472
        %vm475 = vcmask 31744
        %v477 = vsel %vm475, %v466, 0
        %vm479 = vcmask 1043456
        %v481 = vsel %vm479, %v467, 0
        %483 = vmatprep.subr.mxu0 0.0
        %484 = vmatpush1.msra.mxu0 %v481
        %485 = vmatprep.subr.mxu0 0.0
        %486 = vmatpush1.msra.mxu0 0.0
        %487 = vmatprep.subr.mxu0 0.0
        %488 = vmatpush1.msra.mxu0 0.0
        %489 = vmatprep.subr.mxu0 0.0
        %490 = vmatpush1.msra.mxu0 0.0
        %491 = vmatprep.subr.mxu0 0.0
        %492 = vmatpush1.msra.mxu0 0.0
        %493 = vmatprep.subr.mxu0 0.0
        %494 = vmatpush1.msra.mxu0 0.0
        %495 = vmatprep.subr.mxu0 0.0
        %496 = vmatpush1.msra.mxu0 0.0
        %497 = vmatprep.subr.mxu0 0.0
        %498 = vmatpush1.msra.mxu0 0.0
        %499 = vmatprep.subr.mxu0 0.0
        %500 = vmatpush1.msra.mxu0 0.0
        %501 = vmatprep.subr.mxu0 0.0
        %502 = vmatpush1.msra.mxu0 0.0
        %503 = vmatprep.subr.mxu0 0.0
        %504 = vmatpush1.msra.mxu0 0.0
        %505 = vmatprep.subr.mxu0 0.0
        %506 = vmatpush1.msra.mxu0 0.0
        %507 = vmatprep.subr.mxu0 0.0
        %508 = vmatpush1.msra.mxu0 0.0
        %509 = vmatprep.subr.mxu0 0.0
        %510 = vmatpush1.msra.mxu0 0.0
        %511 = vmatprep.subr.mxu0 0.0
        %512 = vmatpush1.msra.mxu0 0.0
        %513 = vmatprep.subr.mxu0 0.0
        %514 = vmatpush1.msra.mxu0 0.0
        %515 = vmatprep.subr.mxu0 0.0
        %516 = vmatpush1.msra.mxu0 0.0
        %517 = vmatprep.subr.mxu0 0.0
        %518 = vmatpush1.msra.mxu0 0.0
        %519 = vmatprep.subr.mxu0 0.0
        %520 = vmatpush1.msra.mxu0 0.0
        %521 = vmatprep.subr.mxu0 0.0
        %522 = vmatpush1.msra.mxu0 0.0
        %523 = vmatprep.subr.mxu0 0.0
        %524 = vmatpush1.msra.mxu0 0.0
        %525 = vmatprep.subr.mxu0 0.0
        %526 = vmatpush1.msra.mxu0 0.0
        %527 = vmatprep.subr.mxu0 0.0
        %528 = vmatpush1.msra.mxu0 0.0
        %529 = vmatprep.subr.mxu0 0.0
        %530 = vmatpush1.msra.mxu0 0.0
        %531 = vmatprep.subr.mxu0 0.0
        %532 = vmatpush1.msra.mxu0 0.0
        %533 = vmatprep.subr.mxu0 0.0
        %534 = vmatpush1.msra.mxu0 0.0
        %535 = vmatprep.subr.mxu0 0.0
        %536 = vmatpush1.msra.mxu0 0.0
        %537 = vmatprep.subr.mxu0 0.0
        %538 = vmatpush1.msra.mxu0 0.0
        %539 = vmatprep.subr.mxu0 0.0
        %540 = vmatpush1.msra.mxu0 0.0
        %541 = vmatprep.subr.mxu0 0.0
        %542 = vmatpush1.msra.mxu0 0.0
        %543 = vmatprep.subr.mxu0 0.0
        %544 = vmatpush1.msra.mxu0 0.0
        %545 = vmatprep.subr.mxu0 0.0
        %546 = vmatpush1.msra.mxu0 0.0
        %547 = vmatprep.mubr.f32.mxu0 0.0
        %548 = vmatmul.mubr.f32.gmra.mrb[0].mxu0 %v477
        %v549 = vpop.f32.mrb[0].mxu0
        %v550 = vadd.f32 %v473, %v549
        %v551 = vpop.f32.mrb[0].mxu0
        %552 = vdwg.mxu0
        %v553 = vmax.f32 %v550, 0.0
        %v554 = vld [vmem:[#allocation11] sm:$0xf]
        %v555 = vld [vmem:[#allocation13] sm:$0x1]
        %v557 = vlaneseq
        %v558 = vshrl.u32 %v557, 7
        %v559 = vsub.s32 0, %v558
        %v560 = vrot.slane %v555, %v559
        %v563 = vsel %vm475, %v553, 0
        %v566 = vsel %vm479, %v554, 0
        %568 = vmatprep.subr.mxu0 0.0
        %569 = vmatpush1.msra.mxu0 %v566
        %570 = vmatprep.subr.mxu0 0.0
        %571 = vmatpush1.msra.mxu0 0.0
        %572 = vmatprep.subr.mxu0 0.0
        %573 = vmatpush1.msra.mxu0 0.0
        %574 = vmatprep.subr.mxu0 0.0
        %575 = vmatpush1.msra.mxu0 0.0
        %576 = vmatprep.subr.mxu0 0.0
        %577 = vmatpush1.msra.mxu0 0.0
        %578 = vmatprep.subr.mxu0 0.0
        %579 = vmatpush1.msra.mxu0 0.0
        %580 = vmatprep.subr.mxu0 0.0
        %581 = vmatpush1.msra.mxu0 0.0
        %582 = vmatprep.subr.mxu0 0.0
        %583 = vmatpush1.msra.mxu0 0.0
        %584 = vmatprep.subr.mxu0 0.0
        %585 = vmatpush1.msra.mxu0 0.0
        %586 = vmatprep.subr.mxu0 0.0
        %587 = vmatpush1.msra.mxu0 0.0
        %588 = vmatprep.subr.mxu0 0.0
        %589 = vmatpush1.msra.mxu0 0.0
        %590 = vmatprep.subr.mxu0 0.0
        %591 = vmatpush1.msra.mxu0 0.0
        %592 = vmatprep.subr.mxu0 0.0
        %593 = vmatpush1.msra.mxu0 0.0
        %594 = vmatprep.subr.mxu0 0.0
        %595 = vmatpush1.msra.mxu0 0.0
        %596 = vmatprep.subr.mxu0 0.0
        %597 = vmatpush1.msra.mxu0 0.0
        %598 = vmatprep.subr.mxu0 0.0
        %599 = vmatpush1.msra.mxu0 0.0
        %600 = vmatprep.subr.mxu0 0.0
        %601 = vmatpush1.msra.mxu0 0.0
        %602 = vmatprep.subr.mxu0 0.0
        %603 = vmatpush1.msra.mxu0 0.0
        %604 = vmatprep.subr.mxu0 0.0
        %605 = vmatpush1.msra.mxu0 0.0
        %606 = vmatprep.subr.mxu0 0.0
        %607 = vmatpush1.msra.mxu0 0.0
        %608 = vmatprep.subr.mxu0 0.0
        %609 = vmatpush1.msra.mxu0 0.0
        %610 = vmatprep.subr.mxu0 0.0
        %611 = vmatpush1.msra.mxu0 0.0
        %612 = vmatprep.subr.mxu0 0.0
        %613 = vmatpush1.msra.mxu0 0.0
        %614 = vmatprep.subr.mxu0 0.0
        %615 = vmatpush1.msra.mxu0 0.0
        %616 = vmatprep.subr.mxu0 0.0
        %617 = vmatpush1.msra.mxu0 0.0
        %618 = vmatprep.subr.mxu0 0.0
        %619 = vmatpush1.msra.mxu0 0.0
        %620 = vmatprep.subr.mxu0 0.0
        %621 = vmatpush1.msra.mxu0 0.0
        %622 = vmatprep.subr.mxu0 0.0
        %623 = vmatpush1.msra.mxu0 0.0
        %624 = vmatprep.subr.mxu0 0.0
        %625 = vmatpush1.msra.mxu0 0.0
        %626 = vmatprep.subr.mxu0 0.0
        %627 = vmatpush1.msra.mxu0 0.0
        %628 = vmatprep.subr.mxu0 0.0
        %629 = vmatpush1.msra.mxu0 0.0
        %630 = vmatprep.subr.mxu0 0.0
        %631 = vmatpush1.msra.mxu0 0.0
        %632 = vmatprep.mubr.f32.mxu0 0.0
        %633 = vmatmul.mubr.f32.gmra.mrb[0].mxu0 %v563
        %v634 = vpop.f32.mrb[0].mxu0
        %v635 = vadd.f32 %v560, %v634
        %v636 = vpop.f32.mrb[0].mxu0
        %637 = vdwg.mxu0
        %v638 = vadd.f32 %v635, %v452
        %v639 = vld [vmem:[#allocation14] sm:$0xff]
        %v640 = vld [vmem:[#allocation14 + $0x8] sm:$0xf]
        %v641 = vld [vmem:[#allocation16] sm:$0xff]
        %v642 = vld [vmem:[#allocation16 + $0x8] sm:$0xf]
        %644 = vset.pattern.permute.xlu0 0
        %645 = vperm.xlu0 %644, %v641
        %v646 = vpop.permute.xlu0 %645
        %649 = vset.pattern.permute.xlu0 0
        %650 = vperm.xlu0 %649, %v642
        %v651 = vpop.permute.xlu0 %650
        %vm653 = vcmask 64512
        %v655 = vsel %vm653, %v639, 0
        %v658 = vsel %vm653, %v640, 0
        %660 = vmatprep.subr.mxu0 0.0
        %661 = vmatpush1.msra.mxu0 %v638
        %662 = vmatprep.subr.mxu0 0.0
        %663 = vmatpush1.msra.mxu0 0.0
        %664 = vmatprep.subr.mxu0 0.0
        %665 = vmatpush1.msra.mxu0 0.0
        %666 = vmatprep.subr.mxu0 0.0
        %667 = vmatpush1.msra.mxu0 0.0
        %668 = vmatprep.subr.mxu0 0.0
        %669 = vmatpush1.msra.mxu0 0.0
        %670 = vmatprep.subr.mxu0 0.0
        %671 = vmatpush1.msra.mxu0 0.0
        %672 = vmatprep.subr.mxu0 0.0
        %673 = vmatpush1.msra.mxu0 0.0
        %674 = vmatprep.subr.mxu0 0.0
        %675 = vmatpush1.msra.mxu0 0.0
        %676 = vmatprep.subr.mxu0 0.0
        %677 = vmatpush1.msra.mxu0 0.0
        %678 = vmatprep.subr.mxu0 0.0
        %679 = vmatpush1.msra.mxu0 0.0
        %680 = vmatprep.subr.mxu0 0.0
        %681 = vmatpush1.msra.mxu0 0.0
        %682 = vmatprep.subr.mxu0 0.0
        %683 = vmatpush1.msra.mxu0 0.0
        %684 = vmatprep.subr.mxu0 0.0
        %685 = vmatpush1.msra.mxu0 0.0
        %686 = vmatprep.subr.mxu0 0.0
        %687 = vmatpush1.msra.mxu0 0.0
        %688 = vmatprep.subr.mxu0 0.0
        %689 = vmatpush1.msra.mxu0 0.0
        %690 = vmatprep.subr.mxu0 0.0
        %691 = vmatpush1.msra.mxu0 0.0
        %692 = vmatprep.subr.mxu0 0.0
        %693 = vmatpush1.msra.mxu0 0.0
        %694 = vmatprep.subr.mxu0 0.0
        %695 = vmatpush1.msra.mxu0 0.0
        %696 = vmatprep.subr.mxu0 0.0
        %697 = vmatpush1.msra.mxu0 0.0
        %698 = vmatprep.subr.mxu0 0.0
        %699 = vmatpush1.msra.mxu0 0.0
        %700 = vmatprep.subr.mxu0 0.0
        %701 = vmatpush1.msra.mxu0 0.0
        %702 = vmatprep.subr.mxu0 0.0
        %703 = vmatpush1.msra.mxu0 0.0
        %704 = vmatprep.subr.mxu0 0.0
        %705 = vmatpush1.msra.mxu0 0.0
        %706 = vmatprep.subr.mxu0 0.0
        %707 = vmatpush1.msra.mxu0 0.0
        %708 = vmatprep.subr.mxu0 0.0
        %709 = vmatpush1.msra.mxu0 0.0
        %710 = vmatprep.subr.mxu0 0.0
        %711 = vmatpush1.msra.mxu0 0.0
        %712 = vmatprep.subr.mxu0 0.0
        %713 = vmatpush1.msra.mxu0 0.0
        %714 = vmatprep.subr.mxu0 0.0
        %715 = vmatpush1.msra.mxu0 0.0
        %716 = vmatprep.subr.mxu0 0.0
        %717 = vmatpush1.msra.mxu0 0.0
        %718 = vmatprep.subr.mxu0 0.0
        %719 = vmatpush1.msra.mxu0 0.0
        %720 = vmatprep.subr.mxu0 0.0
        %721 = vmatpush1.msra.mxu0 0.0
        %722 = vmatprep.subr.mxu0 0.0
        %723 = vmatpush1.msra.mxu0 0.0
        %724 = vmatprep.mubr.f32.mxu0 0.0
        %725 = vmatmul.mubr.f32.gmra.mrb[0].mxu0 %v655
        %v726 = vpop.f32.mrb[0].mxu0
        %v727 = vadd.f32 %v646, %v726
        %v728 = vpop.f32.mrb[0].mxu0
        %729 = vmatprep.mubr.f32.mxu0 0.0
        %730 = vmatmul.mubr.f32.gmra.mrb[0].mxu0 %v658
        %v731 = vpop.f32.mrb[0].mxu0
        %v732 = vadd.f32 %v651, %v731
        %v733 = vpop.f32.mrb[0].mxu0
        %734 = vdwg.mxu0
        %735 = vst.msk [vmem:[%s451] sm:$0xff] %vm475, %v727
        %vm736 = vcmask 27648
        %737 = vst.msk [vmem:[%s451 + $0x8] sm:$0xf] %vm736, %v732
        %s738 = sand.u32 %s232, 1
        %s739 = scalar_lea.sflag [#allocation4], %s738
        %s740 = sand.u32 %s232, 1
        %s741 = smul.addr %s740, 16
        %s742 = scalar_lea.vmem [#allocation17], %s741
        // Predicated region
        $region93: #{backbone_forward.1} parent=55 // pred_check
          %p743 = pneg %p242
        $region94: #{backbone_forward.1} parent=55 // pred_check_branch
          %745 = sbr.rel (%p743) target = $region96
        $region95: #{backbone_forward.1} parent=55 // pred_region
          %s747 = ssub.s32 256, 256
          %748 = vsyncadd %s739, %s747
          %s749 = smul.addr %s30, 2
          %s750 = smul.addr %s749, 128
          %s751 = scalar_lea.hbm %s9, %s750
          %s752 = sshll.u32 %s742, 4
          %s753 = int_to_ptr.vmem [resolvable:$true] %s752
          %758 = dma.vmem_to_hbm [thread:$0]  %s753, 256, %s751, %s739, 128, 128, 8
        $region96: #{backbone_forward.1} parent=55 // pred_fallthru
          _
      $region56: #{backbone_forward.1} parent=5 // pred_fallthru
        _
      %p759 = scmp.le.s32.totalorder 2, %s25
      // Predicated region
      $region97: #{backbone_forward.1} parent=5 // pred_check
        %p760 = pneg %p759
      $region98: #{backbone_forward.1} parent=5 // pred_check_branch
        %762 = sbr.rel (%p760) target = $region100
      $region99: #{backbone_forward.1} parent=5 // pred_region
        %s763 = ssub.s32 %s25, 2
        // Predicated region
        $region101: #{backbone_forward.1} parent=99 // pred_check
          %p764 = pneg %p248
        $region102: #{backbone_forward.1} parent=99 // pred_check_branch
          %766 = sbr.rel (%p764) target = $region104
        $region103: #{backbone_forward.1} parent=99 // pred_region
          %s767 = sand.u32 %s233, 1
          %s768 = scalar_lea.sflag [#allocation4], %s767
          %s769 = sand.u32 %s233, 1
          %s770 = smul.addr %s769, 16
          %s771 = scalar_lea.vmem [#allocation17], %s770
          %772 = dma.done %s768, 256
        $region104: #{backbone_forward.1} parent=99 // pred_fallthru
          _
      $region100: #{backbone_forward.1} parent=5 // pred_fallthru
        _
    $region6: #{backbone_forward.1} parent=1 // loop_footer
      %s29 = sadd.s32 1, %s25
    $region7: #{backbone_forward.1} parent=1 // loop_footer_branch
      %24 = sbr.rel target = $region3
    $region8: #{backbone_forward.1} parent=1 // loop_exit
      _
    %773 = vsyncpa [#allocation3], 1
    %s774 = scalar_lea.sflag [#allocation3], 1
    %775 = vsyncpa %s774, 1
    %776 = vsyncpa [#allocation6], 1
    %777 = vsyncpa [#allocation9], 1
    %778 = vsyncpa [#allocation12], 1
    %779 = vsyncpa [#allocation15], 1
    %780 = vsyncpa [#allocation4], 1
    %s781 = scalar_lea.sflag [#allocation4], 1
    %782 = vsyncpa %s781, 1

</llo_original>
